<compile_context>
chip_gen: v7x
topology: tpu7x:2x2x1
jax: 0.10.0
libtpu: 0.0.40
codegen_flags: <defaults>
</compile_context>

<pallas_src>
import jax
import jax.numpy as jnp
from jax import lax
from jax.experimental import pallas as pl
from jax.experimental.pallas import tpu as pltpu


def _round_up(x, m):
    return ((x + m - 1) // m) * m


def ffn_kernel(x_ref, gamma_ref, beta_ref, w1_ref, b1_ref, w2_ref, b2_ref,
               o_ref, normed_ref, acc_ref):
    """One (row-tile, F-tile) grid step of the pre-LN FFN block."""
    fi = pl.program_id(1)

    # --- LayerNorm, computed once per row tile (hoisted out of the F loop).
    # Cache the bf16 MXU operand in VMEM scratch; seed the f32 accumulator with
    # the residual (`normed`, as in the PyTorch module; Dropout2 == identity).
    @pl.when(fi == 0)
    def _():
        x = x_ref[...].astype(jnp.float32)
        mean = jnp.mean(x, axis=-1, keepdims=True)
        var = jnp.mean((x - mean) ** 2, axis=-1, keepdims=True)
        inv = lax.rsqrt(var + 1e-5)
        normed = (x - mean) * inv * gamma_ref[...] + beta_ref[...]
        normed_ref[...] = normed.astype(jnp.bfloat16)
        acc_ref[...] = normed

    # --- Linear1 (bf16 MXU operands, f32 accumulate) -> ReLU (Dropout1 == identity).
    h = jnp.dot(normed_ref[...], w1_ref[...],
                preferred_element_type=jnp.float32) + b1_ref[...]
    h = jnp.maximum(h, 0.0)

    # --- Partial Linear2 contribution from this F tile, accumulated in f32 scratch.
    acc_ref[...] += jnp.dot(h.astype(jnp.bfloat16), w2_ref[...],
                            preferred_element_type=jnp.float32)

    # --- Finalize: add the output bias once and write the tile.
    @pl.when(fi == pl.num_programs(1) - 1)
    def _():
        o_ref[...] = (acc_ref[...] + b2_ref[...]).astype(o_ref.dtype)


def feed_forward_block(x, gamma, beta, w1, b1, w2, b2, *,
                       tile_n=512, tile_f=None,
                       resident_weight_budget_bytes=40 << 20):
    """x: (B, S, d_model). Weights as (in_features, out_features). Returns (B, S, d_model)."""
    B, S, D = x.shape
    F_ = w1.shape[1]
    N = B * S

    # Row tile: sublane-aligned, no larger than the (padded) problem.
    tile_n_eff = _round_up(min(tile_n, _round_up(N, 8)), 8)
    n_pad = _round_up(N, tile_n_eff)
    num_row_tiles = n_pad // tile_n_eff

    # F tile: keep W1/W2 fully VMEM-resident (tile_f == F -> constant block index,
    # weights DMA'd exactly once for the whole grid) when the double-buffered bf16
    # footprint fits the budget; otherwise stream lane-aligned F tiles.
    resident_bytes = 2 * (D * F_ + F_ * D) * 2  # 2 buffers x (W1 + W2) x bf16
    if tile_f is None:
        tile_f = F_ if resident_bytes <= resident_weight_budget_bytes else 512
    tile_f_eff = min(tile_f, F_)
    if tile_f_eff != F_:
        assert F_ % tile_f_eff == 0 and tile_f_eff % 128 == 0, (
            "tile_f must divide d_feedforward and be a multiple of 128 when tiling F")
    num_f_tiles = F_ // tile_f_eff

    x2d = x.reshape(N, D)
    if n_pad != N:
        # TODO(synk): replace pad/slice round trip with a masked tail store for large N.
        x2d = jnp.pad(x2d, ((0, n_pad - N), (0, 0)))

    # Kernel dtypes. Casts are no-ops when callers already store bf16 weights
    # (recommended: cast once outside the hot path, as done in __main__ below).
    w1b = w1 if w1.dtype == jnp.bfloat16 else w1.astype(jnp.bfloat16)
    w2b = w2 if w2.dtype == jnp.bfloat16 else w2.astype(jnp.bfloat16)
    gamma2 = gamma.reshape(1, D).astype(jnp.float32)
    beta2 = beta.reshape(1, D).astype(jnp.float32)
    b1_2 = b1.reshape(1, F_).astype(jnp.float32)
    b2_2 = b2.reshape(1, D).astype(jnp.float32)

    # Explicit scoped-VMEM limit derived from the block working set (+25% headroom),
    # so larger tiles are not rejected by the 16/32 MiB defaults.
    x_bytes = x2d.dtype.itemsize
    out_bytes = x.dtype.itemsize
    vmem_bytes = int(1.25 * (
        2 * tile_n_eff * D * x_bytes                    # x blocks (double-buffered)
        + 2 * (3 * D + tile_f_eff) * 4                  # gamma/beta/b2 + b1 blocks
        + 2 * (D * tile_f_eff + tile_f_eff * D) * 2     # W1 + W2 bf16 blocks
        + 2 * tile_n_eff * D * out_bytes                # output blocks
        + tile_n_eff * D * 4                            # f32 accumulator scratch
        + tile_n_eff * D * 2                            # bf16 cached-normed scratch
    ))
    vmem_bytes = min(max(vmem_bytes, 32 << 20), 128 << 20)

    grid = (num_row_tiles, num_f_tiles)

    out = pl.pallas_call(
        ffn_kernel,
        out_shape=jax.ShapeDtypeStruct((n_pad, D), x.dtype),
        grid_spec=pltpu.PrefetchScalarGridSpec(
            num_scalar_prefetch=0,
            grid=grid,
            in_specs=[
                pl.BlockSpec((tile_n_eff, D), lambda i, f: (i, 0)),   # x rows
                pl.BlockSpec((1, D), lambda i, f: (0, 0)),            # gamma
                pl.BlockSpec((1, D), lambda i, f: (0, 0)),            # beta
                pl.BlockSpec((D, tile_f_eff), lambda i, f: (0, f)),   # W1 tile (bf16)
                pl.BlockSpec((1, tile_f_eff), lambda i, f: (0, f)),   # b1 tile
                pl.BlockSpec((tile_f_eff, D), lambda i, f: (f, 0)),   # W2 tile (bf16)
                pl.BlockSpec((1, D), lambda i, f: (0, 0)),            # b2
            ],
            out_specs=pl.BlockSpec((tile_n_eff, D), lambda i, f: (i, 0)),
            scratch_shapes=[
                pltpu.VMEM((tile_n_eff, D), jnp.bfloat16),   # cached normed (MXU LHS)
                pltpu.VMEM((tile_n_eff, D), jnp.float32),    # f32 accumulator
            ],
        ),
        compiler_params=pltpu.CompilerParams(
            dimension_semantics=("parallel", "arbitrary"),
            vmem_limit_bytes=vmem_bytes,
        ),
    )(x2d, gamma2, beta2, w1b, b1_2, w2b, b2_2)

    if n_pad != N:
        out = out[:N]
    return out.reshape(B, S, D)


def reference(x, gamma, beta, w1, b1, w2, b2):
    xf = x.astype(jnp.float32)
    mean = jnp.mean(xf, axis=-1, keepdims=True)
    var = jnp.mean((xf - mean) ** 2, axis=-1, keepdims=True)
    normed = (xf - mean) * lax.rsqrt(var + 1e-5) * gamma + beta
    h = jnp.maximum(normed @ w1.astype(jnp.float32) + b1, 0.0)
    proj = h @ w2.astype(jnp.float32) + b2
    return (normed + proj).astype(x.dtype)


if __name__ == "__main__":
    d_model = 32
    d_feedforward = 64
    B, S = 2, 8

    key = jax.random.PRNGKey(0)
    kx, kg, kb, kw1, kb1, kw2, kb2 = jax.random.split(key, 7)

    x = jax.random.normal(kx, (B, S, d_model), dtype=jnp.float32)

    # Deterministic synthetic parameters (PyTorch-like scales).
    gamma = 1.0 + 0.1 * jax.random.normal(kg, (d_model,), dtype=jnp.float32)
    beta = 0.1 * jax.random.normal(kb, (d_model,), dtype=jnp.float32)
    lim1 = 1.0 / (d_model ** 0.5)
    lim2 = 1.0 / (d_feedforward ** 0.5)
    w1 = jax.random.uniform(kw1, (d_model, d_feedforward), minval=-lim1, maxval=lim1)
    b1 = jax.random.uniform(kb1, (d_feedforward,), minval=-lim1, maxval=lim1)
    w2 = jax.random.uniform(kw2, (d_feedforward, d_model), minval=-lim2, maxval=lim2)
    b2 = jax.random.uniform(kb2, (d_model,), minval=-lim2, maxval=lim2)

    # Cast weights to bf16 ONCE, outside the hot path (kernel stores weights bf16).
    w1 = w1.astype(jnp.bfloat16)
    w2 = w2.astype(jnp.bfloat16)

    out = feed_forward_block(x, gamma, beta, w1, b1, w2, b2)
    out = jax.block_until_ready(out)

    ref = reference(x, gamma, beta, w1, b1, w2, b2)
    assert out.shape == (B, S, d_model)
    # bf16 MXU operands vs. f32 math -> relaxed tolerance.
    assert jnp.allclose(out, ref, atol=2e-2, rtol=2e-2), "mismatch vs reference"

    print("KERNEL_OK")
</pallas_src>

<mosaic_0001>
module attributes {stable_mosaic.version = 11 : i64} {
  func.func @ffn_kernel(%arg0: i32, %arg1: i32, %arg2: memref<16x32xf32, #tpu.memory_space<vmem>>, %arg3: memref<1x32xf32, #tpu.memory_space<vmem>>, %arg4: memref<1x32xf32, #tpu.memory_space<vmem>>, %arg5: memref<32x64xbf16, #tpu.memory_space<vmem>>, %arg6: memref<1x64xf32, #tpu.memory_space<vmem>>, %arg7: memref<64x32xbf16, #tpu.memory_space<vmem>>, %arg8: memref<1x32xf32, #tpu.memory_space<vmem>>, %arg9: memref<16x32xf32, #tpu.memory_space<vmem>>, %arg10: memref<16x32xbf16, #tpu.memory_space<vmem>>, %arg11: memref<16x32xf32, #tpu.memory_space<vmem>>) attributes {dimension_semantics = [#tpu.dimension_semantics<parallel>, #tpu.dimension_semantics<arbitrary>], iteration_bounds = array<i64: 1, 1>, scalar_prefetch = 0 : i64, scratch_operands = 2 : i64, tpu.core_type = #tpu.core_type<tc>, window_params = [{transform_indices = @transform_0, window_bounds = array<i64: 16, 32>}, {pipeline_mode = #tpu.pipeline_mode<synchronous>, transform_indices = @transform_1, window_bounds = array<i64: 1, 32>}, {pipeline_mode = #tpu.pipeline_mode<synchronous>, transform_indices = @transform_2, window_bounds = array<i64: 1, 32>}, {transform_indices = @transform_3, window_bounds = array<i64: 32, 64>}, {transform_indices = @transform_4, window_bounds = array<i64: 1, 64>}, {transform_indices = @transform_5, window_bounds = array<i64: 64, 32>}, {pipeline_mode = #tpu.pipeline_mode<synchronous>, transform_indices = @transform_6, window_bounds = array<i64: 1, 32>}, {transform_indices = @transform_7, window_bounds = array<i64: 16, 32>}]} {
    %c0_i32 = arith.constant 0 : i32
    %0 = arith.cmpi eq, %arg1, %c0_i32 : i32
    %1 = arith.extui %0 : i1 to i32
    %c0_i32_0 = arith.constant 0 : i32
    %2 = arith.cmpi ne, %1, %c0_i32_0 : i32
    scf.if %2 {
      %c0_16 = arith.constant 0 : index
      %c0_17 = arith.constant 0 : index
      %20 = vector.load %arg2[%c0_16, %c0_17] : memref<16x32xf32, #tpu.memory_space<vmem>>, vector<16x32xf32>
      %cst_18 = arith.constant dense<0.000000e+00> : vector<16xf32>
      %21 = vector.multi_reduction <add>, %20, %cst_18 [1] : vector<16x32xf32> to vector<16xf32>
      %22 = vector.shape_cast %21 : vector<16xf32> to vector<16x1xf32>
      %cst_19 = arith.constant 3.200000e+01 : f32
      %23 = vector.broadcast %cst_19 : f32 to vector<16x1xf32>
      %24 = arith.divf %22, %23 : vector<16x1xf32>
      %25 = vector.broadcast %24 : vector<16x1xf32> to vector<16x32xf32>
      %26 = arith.subf %20, %25 : vector<16x32xf32>
      %27 = arith.mulf %26, %26 : vector<16x32xf32>
      %cst_20 = arith.constant dense<0.000000e+00> : vector<16xf32>
      %28 = vector.multi_reduction <add>, %27, %cst_20 [1] : vector<16x32xf32> to vector<16xf32>
      %29 = vector.shape_cast %28 : vector<16xf32> to vector<16x1xf32>
      %cst_21 = arith.constant 3.200000e+01 : f32
      %30 = vector.broadcast %cst_21 : f32 to vector<16x1xf32>
      %31 = arith.divf %29, %30 : vector<16x1xf32>
      %cst_22 = arith.constant 9.99999974E-6 : f32
      %32 = vector.broadcast %cst_22 : f32 to vector<16x1xf32>
      %33 = arith.addf %31, %32 : vector<16x1xf32>
      %34 = math.rsqrt %33 : vector<16x1xf32>
      %35 = vector.broadcast %24 : vector<16x1xf32> to vector<16x32xf32>
      %36 = arith.subf %20, %35 : vector<16x32xf32>
      %37 = vector.broadcast %34 : vector<16x1xf32> to vector<16x32xf32>
      %38 = arith.mulf %36, %37 : vector<16x32xf32>
      %c0_23 = arith.constant 0 : index
      %c0_24 = arith.constant 0 : index
      %39 = vector.load %arg3[%c0_23, %c0_24] : memref<1x32xf32, #tpu.memory_space<vmem>>, vector<1x32xf32>
      %40 = vector.broadcast %39 : vector<1x32xf32> to vector<16x32xf32>
      %41 = arith.mulf %38, %40 : vector<16x32xf32>
      %c0_25 = arith.constant 0 : index
      %c0_26 = arith.constant 0 : index
      %42 = vector.load %arg4[%c0_25, %c0_26] : memref<1x32xf32, #tpu.memory_space<vmem>>, vector<1x32xf32>
      %43 = vector.broadcast %42 : vector<1x32xf32> to vector<16x32xf32>
      %44 = arith.addf %41, %43 : vector<16x32xf32>
      %45 = arith.truncf %44 : vector<16x32xf32> to vector<16x32xbf16>
      %c0_27 = arith.constant 0 : index
      %c0_28 = arith.constant 0 : index
      %46 = vector.load %arg10[%c0_27, %c0_28] : memref<16x32xbf16, #tpu.memory_space<vmem>>, vector<16x32xbf16>
      tpu.vector_store %arg10[%c0_27, %c0_28], %45 {strides = array<i32>} : memref<16x32xbf16, #tpu.memory_space<vmem>>, vector<16x32xbf16>,
      %c0_29 = arith.constant 0 : index
      %c0_30 = arith.constant 0 : index
      %47 = vector.load %arg11[%c0_29, %c0_30] : memref<16x32xf32, #tpu.memory_space<vmem>>, vector<16x32xf32>
      tpu.vector_store %arg11[%c0_29, %c0_30], %44 {strides = array<i32>} : memref<16x32xf32, #tpu.memory_space<vmem>>, vector<16x32xf32>,
    } else {
    }
    %c0 = arith.constant 0 : index
    %c0_1 = arith.constant 0 : index
    %3 = vector.load %arg10[%c0, %c0_1] : memref<16x32xbf16, #tpu.memory_space<vmem>>, vector<16x32xbf16>
    %c0_2 = arith.constant 0 : index
    %c0_3 = arith.constant 0 : index
    %4 = vector.load %arg5[%c0_2, %c0_3] : memref<32x64xbf16, #tpu.memory_space<vmem>>, vector<32x64xbf16>
    %cst = arith.constant dense<0.000000e+00> : vector<16x64xf32>
    %5 = tpu.matmul %3, %4, %cst {dimension_numbers = #tpu.dot_dimension_numbers<[1], [0], [0], [1], [0, 0, 1, 1], [], []>} : vector<16x32xbf16>, vector<32x64xbf16>, vector<16x64xf32> -> vector<16x64xf32>
    %c0_4 = arith.constant 0 : index
    %c0_5 = arith.constant 0 : index
    %6 = vector.load %arg6[%c0_4, %c0_5] : memref<1x64xf32, #tpu.memory_space<vmem>>, vector<1x64xf32>
    %7 = vector.broadcast %6 : vector<1x64xf32> to vector<16x64xf32>
    %8 = arith.addf %5, %7 : vector<16x64xf32>
    %cst_6 = arith.constant 0.000000e+00 : f32
    %9 = vector.broadcast %cst_6 : f32 to vector<16x64xf32>
    %10 = arith.maximumf %8, %9 : vector<16x64xf32>
    %c0_7 = arith.constant 0 : index
    %c0_8 = arith.constant 0 : index
    %11 = vector.load %arg11[%c0_7, %c0_8] : memref<16x32xf32, #tpu.memory_space<vmem>>, vector<16x32xf32>
    %12 = arith.truncf %10 : vector<16x64xf32> to vector<16x64xbf16>
    %c0_9 = arith.constant 0 : index
    %c0_10 = arith.constant 0 : index
    %13 = vector.load %arg7[%c0_9, %c0_10] : memref<64x32xbf16, #tpu.memory_space<vmem>>, vector<64x32xbf16>
    %cst_11 = arith.constant dense<0.000000e+00> : vector<16x32xf32>
    %14 = tpu.matmul %12, %13, %cst_11 {dimension_numbers = #tpu.dot_dimension_numbers<[1], [0], [0], [1], [0, 0, 1, 1], [], []>} : vector<16x64xbf16>, vector<64x32xbf16>, vector<16x32xf32> -> vector<16x32xf32>
    %15 = arith.addf %11, %14 : vector<16x32xf32>
    %c0_12 = arith.constant 0 : index
    %c0_13 = arith.constant 0 : index
    %16 = vector.load %arg11[%c0_12, %c0_13] : memref<16x32xf32, #tpu.memory_space<vmem>>, vector<16x32xf32>
    tpu.vector_store %arg11[%c0_12, %c0_13], %15 {strides = array<i32>} : memref<16x32xf32, #tpu.memory_space<vmem>>, vector<16x32xf32>,
    %c0_i32_14 = arith.constant 0 : i32
    %17 = arith.cmpi eq, %arg1, %c0_i32_14 : i32
    %18 = arith.extui %17 : i1 to i32
    %c0_i32_15 = arith.constant 0 : i32
    %19 = arith.cmpi ne, %18, %c0_i32_15 : i32
    scf.if %19 {
      %c0_16 = arith.constant 0 : index
      %c0_17 = arith.constant 0 : index
      %20 = vector.load %arg11[%c0_16, %c0_17] : memref<16x32xf32, #tpu.memory_space<vmem>>, vector<16x32xf32>
      %c0_18 = arith.constant 0 : index
      %c0_19 = arith.constant 0 : index
      %21 = vector.load %arg8[%c0_18, %c0_19] : memref<1x32xf32, #tpu.memory_space<vmem>>, vector<1x32xf32>
      %22 = vector.broadcast %21 : vector<1x32xf32> to vector<16x32xf32>
      %23 = arith.addf %20, %22 : vector<16x32xf32>
      %c0_20 = arith.constant 0 : index
      %c0_21 = arith.constant 0 : index
      %24 = vector.load %arg9[%c0_20, %c0_21] : memref<16x32xf32, #tpu.memory_space<vmem>>, vector<16x32xf32>
      tpu.vector_store %arg9[%c0_20, %c0_21], %23 {strides = array<i32>} : memref<16x32xf32, #tpu.memory_space<vmem>>, vector<16x32xf32>,
    } else {
    }
    return
  }
  func.func @transform_0(%arg0: i32, %arg1: i32) -> (i32, i32) {
    %c0_i32 = arith.constant 0 : i32
    %c0_i32_0 = arith.constant 0 : i32
    return %arg0, %c0_i32 : i32, i32
  }
  func.func @transform_1(%arg0: i32, %arg1: i32) -> (i32, i32) {
    %c0_i32 = arith.constant 0 : i32
    %c0_i32_0 = arith.constant 0 : i32
    %c0_i32_1 = arith.constant 0 : i32
    return %c0_i32, %c0_i32_0 : i32, i32
  }
  func.func @transform_2(%arg0: i32, %arg1: i32) -> (i32, i32) {
    %c0_i32 = arith.constant 0 : i32
    %c0_i32_0 = arith.constant 0 : i32
    %c0_i32_1 = arith.constant 0 : i32
    return %c0_i32, %c0_i32_0 : i32, i32
  }
  func.func @transform_3(%arg0: i32, %arg1: i32) -> (i32, i32) {
    %c0_i32 = arith.constant 0 : i32
    %c0_i32_0 = arith.constant 0 : i32
    return %c0_i32, %arg1 : i32, i32
  }
  func.func @transform_4(%arg0: i32, %arg1: i32) -> (i32, i32) {
    %c0_i32 = arith.constant 0 : i32
    %c0_i32_0 = arith.constant 0 : i32
    return %c0_i32, %arg1 : i32, i32
  }
  func.func @transform_5(%arg0: i32, %arg1: i32) -> (i32, i32) {
    %c0_i32 = arith.constant 0 : i32
    %c0_i32_0 = arith.constant 0 : i32
    return %arg1, %c0_i32 : i32, i32
  }
  func.func @transform_6(%arg0: i32, %arg1: i32) -> (i32, i32) {
    %c0_i32 = arith.constant 0 : i32
    %c0_i32_0 = arith.constant 0 : i32
    %c0_i32_1 = arith.constant 0 : i32
    return %c0_i32, %c0_i32_0 : i32, i32
  }
  func.func @transform_7(%arg0: i32, %arg1: i32) -> (i32, i32) {
    %c0_i32 = arith.constant 0 : i32
    %c0_i32_0 = arith.constant 0 : i32
    return %arg0, %c0_i32 : i32, i32
  }
}

</mosaic_0001>

<llo_original>
// kernel: tpu_custom_call.1
$region0: #{tpu_custom_call.1}
  #allocation0 [shape = 'u32[]', space=smem, size = 0x4, offset = 0x4, fixed_abs, tag = 'smem constant byte address 0x4 - core index']
  #allocation1 [shape = 'u32[144,128]{1,0:T(1,128)}', space=vmem, size = 0x12000, scoped, tag = 'internal scratch']
  #allocation2 [shape = 'bf16[16,32]{1,0:T(16,128)(2,1)}', space=vmem, size = 0x1000, scoped, tag = 'scratch operand']
  #allocation3 [shape = 'f32[16,32]{1,0:T(8,128)}', space=vmem, size = 0x2000, scoped, tag = 'scratch operand']
  %s0 = inlined_call_operand.vmem [shape: f32[16,32], index: 0, kind: input, shape index: {}]
  %s1 = inlined_call_operand.vmem [shape: f32[1,32], index: 1, kind: input, shape index: {}]
  %s2 = inlined_call_operand.vmem [shape: f32[1,32], index: 2, kind: input, shape index: {}]
  %s3 = inlined_call_operand.vmem [shape: bf16[32,64], index: 3, kind: input, shape index: {}]
  %s4 = inlined_call_operand.vmem [shape: f32[1,64], index: 4, kind: input, shape index: {}]
  %s5 = inlined_call_operand.vmem [shape: bf16[64,32], index: 5, kind: input, shape index: {}]
  %s6 = inlined_call_operand.vmem [shape: f32[1,32], index: 6, kind: input, shape index: {}]
  %s7 = inlined_call_operand.hbm [shape: f32[16,32], index: 7, kind: output, shape index: {}]
  %s8 = sld [smem:[#allocation0]]
  $region46: #{tpu_custom_call.1} parent=0
    _
  %s10 = ssub.s32 1, %s8
  %s11 = scalar_select 0, %s10, %s8
  $region1: #{tpu_custom_call.1} parent=0
    #allocation4 [shape = 'u8[8192]{0}', space=vmem, size = 0x2000, scoped, tag = 'output window, operand 0, single buffered']
    #allocation5 [shape = 's32[1]{0}', space=sflag, size = 0x4, scoped, tag = 'scoped memory for tpu_custom_call.1']
    %12 = vsyncpa [#allocation5], 0
    // Predicated region
    $region2: #{tpu_custom_call.1} parent=1 // pred_check
      _
    $region3: #{tpu_custom_call.1} parent=1 // pred_check_branch
      %14 = sbr.rel (0) target = $region5
    $region4: #{tpu_custom_call.1} parent=1 // pred_region
      _
    $region5: #{tpu_custom_call.1} parent=1 // pred_fallthru
      _
    // Predicated region
    $region6: #{tpu_custom_call.1} parent=1 // pred_check
      _
    $region7: #{tpu_custom_call.1} parent=1 // pred_check_branch
      %16 = sbr.rel (0) target = $region9
    $region8: #{tpu_custom_call.1} parent=1 // pred_region
      _
    $region9: #{tpu_custom_call.1} parent=1 // pred_fallthru
      _
    // Predicated region
    $region10: #{tpu_custom_call.1} parent=1 // pred_check
      _
    $region11: #{tpu_custom_call.1} parent=1 // pred_check_branch
      %18 = sbr.rel (0) target = $region13
    $region12: #{tpu_custom_call.1} parent=1 // pred_region
      _
    $region13: #{tpu_custom_call.1} parent=1 // pred_fallthru
      _
    // Predicated region
    $region14: #{tpu_custom_call.1} parent=1 // pred_check
      _
    $region15: #{tpu_custom_call.1} parent=1 // pred_check_branch
      %20 = sbr.rel (0) target = $region17
    $region16: #{tpu_custom_call.1} parent=1 // pred_region
      _
    $region17: #{tpu_custom_call.1} parent=1 // pred_fallthru
      _
    // Predicated region
    $region18: #{tpu_custom_call.1} parent=1 // pred_check
      _
    $region19: #{tpu_custom_call.1} parent=1 // pred_check_branch
      %22 = sbr.rel (0) target = $region21
    $region20: #{tpu_custom_call.1} parent=1 // pred_region
      _
    $region21: #{tpu_custom_call.1} parent=1 // pred_fallthru
      _
    // Predicated region
    $region22: #{tpu_custom_call.1} parent=1 // pred_check
      _
    $region23: #{tpu_custom_call.1} parent=1 // pred_check_branch
      %24 = sbr.rel (0) target = $region25
    $region24: #{tpu_custom_call.1} parent=1 // pred_region
      _
    $region25: #{tpu_custom_call.1} parent=1 // pred_fallthru
      _
    // Predicated region
    $region26: #{tpu_custom_call.1} parent=1 // pred_check
      _
    $region27: #{tpu_custom_call.1} parent=1 // pred_check_branch
      %26 = sbr.rel (0) target = $region29
    $region28: #{tpu_custom_call.1} parent=1 // pred_region
      _
    $region29: #{tpu_custom_call.1} parent=1 // pred_fallthru
      _
    %p28 = scmp.eq.s32.totalorder 0, 0
    // Predicated region
    $region30: #{tpu_custom_call.1} parent=1 // pred_check
      %p29 = pneg %p28
    $region31: #{tpu_custom_call.1} parent=1 // pred_check_branch
      %31 = sbr.rel (%p29) target = $region33
    $region32: #{tpu_custom_call.1} parent=1 // pred_region
      %v32 = vld [vmem:[%s0] sm:$0xff]
      %v33 = vld [vmem:[%s0 + $0x8] sm:$0xff]
      %vm34 = vcmask 261120
      %v35 = vsel %vm34, %v32, 0.0
      %36 = vadd.xlane.f32.xlu0 %v35
      %v37 = vpop.xlane.xlu0 %36
      %v38 = vsel %vm34, %v33, 0.0
      %39 = vadd.xlane.f32.xlu0 %v38
      %v40 = vpop.xlane.xlu0 %39
      %v41 = vrcp.pop 32.0
      %v42 = vmul.f32 %v37, %v41
      %v43 = vmul.f32 %v40, %v41
      %v44 = vsub.f32 %v32, %v42
      %v45 = vsub.f32 %v33, %v43
      %v46 = vmul.f32 %v44, %v44
      %v47 = vmul.f32 %v45, %v45
      %v48 = vsel %vm34, %v46, 0.0
      %49 = vadd.xlane.f32.xlu0 %v48
      %v50 = vpop.xlane.xlu0 %49
      %v51 = vsel %vm34, %v47, 0.0
      %52 = vadd.xlane.f32.xlu0 %v51
      %v53 = vpop.xlane.xlu0 %52
      %v54 = vmul.f32 %v50, %v41
      %v55 = vmul.f32 %v53, %v41
      %v56 = vadd.f32 %v54, 1e-05
      %v57 = vadd.f32 %v55, 1e-05
      %v58 = vrsqrt.pop %v56
      %v59 = vrsqrt.pop %v57
      %v60 = vmul.f32 %v44, %v58
      %v61 = vmul.f32 %v45, %v59
      %v62 = vld [vmem:[%s1] sm:$0x1]
      %v64 = vlaneseq
      %v65 = vshrl.u32 %v64, 7
      %v66 = vsub.s32 0, %v65
      %v67 = vrot.slane %v62, %v66
      %v69 = vmul.f32 %v60, %v67
      %v70 = vmul.f32 %v61, %v67
      %v71 = vld [vmem:[%s2] sm:$0x1]
      %v73 = vlaneseq
      %v74 = vshrl.u32 %v73, 7
      %v75 = vsub.s32 0, %v74
      %v76 = vrot.slane %v71, %v75
      %v78 = vadd.f32 %v69, %v76
      %v79 = vadd.f32 %v70, %v76
      %v80 = vpack.c.bf16 %v79, %v78
      %81 = vst.msk [vmem:[#allocation2] sm:$0xff] %vm34, %v80
      %82 = vst.msk [vmem:[#allocation3] sm:$0xff] %vm34, %v78
      %83 = vst.msk [vmem:[#allocation3 + $0x8] sm:$0xff] %vm34, %v79
    $region33: #{tpu_custom_call.1} parent=1 // pred_fallthru
      _
    %v84 = vld [vmem:[#allocation2] sm:$0xff]
    %v85 = vld [vmem:[%s3] sm:$0xf]
    %v86 = vld [vmem:[%s3 + $0x4] sm:$0xf]
    %v87 = vld [vmem:[%s3 + $0x8] sm:$0xf]
    %v88 = vld [vmem:[%s3 + $0xc] sm:$0xf]
    %v89 = vld [vmem:[%s4] sm:$0x1]
    %v91 = vlaneseq
    %v92 = vshrl.u32 %v91, 7
    %v93 = vsub.s32 0, %v92
    %v94 = vrot.slane %v89, %v93
    %v100 = vunpack.c.l.b16 %v85
    %v101 = vunpack.c.l.b16 %v86
    %v102 = vunpack.c.l.b16 %v87
    %v103 = vunpack.c.l.b16 %v88
    %v104 = vpack.c.b16 %v101, %v100
    %v105 = vpack.c.b16 %v103, %v102
    %vm108 = vcmask 261120
    %v110 = vsel %vm108, %v84, 0
    %112 = vmatprep.subr.bf16.mxu0 0
    %113 = vmatpush1.bf16.msra.mxu0 %v104
    %114 = vmatprep.subr.bf16.mxu0 0
    %115 = vmatpush1.bf16.msra.mxu0 %v105
    %116 = vmatprep.subr.bf16.mxu0 0
    %117 = vmatpush1.bf16.msra.mxu0 0
    %118 = vmatprep.subr.bf16.mxu0 0
    %119 = vmatpush1.bf16.msra.mxu0 0
    %120 = vmatprep.subr.bf16.mxu0 0
    %121 = vmatpush1.bf16.msra.mxu0 0
    %122 = vmatprep.subr.bf16.mxu0 0
    %123 = vmatpush1.bf16.msra.mxu0 0
    %124 = vmatprep.subr.bf16.mxu0 0
    %125 = vmatpush1.bf16.msra.mxu0 0
    %126 = vmatprep.subr.bf16.mxu0 0
    %127 = vmatpush1.bf16.msra.mxu0 0
    %128 = vmatprep.subr.bf16.mxu0 0
    %129 = vmatpush1.bf16.msra.mxu0 0
    %130 = vmatprep.subr.bf16.mxu0 0
    %131 = vmatpush1.bf16.msra.mxu0 0
    %132 = vmatprep.subr.bf16.mxu0 0
    %133 = vmatpush1.bf16.msra.mxu0 0
    %134 = vmatprep.subr.bf16.mxu0 0
    %135 = vmatpush1.bf16.msra.mxu0 0
    %136 = vmatprep.subr.bf16.mxu0 0
    %137 = vmatpush1.bf16.msra.mxu0 0
    %138 = vmatprep.subr.bf16.mxu0 0
    %139 = vmatpush1.bf16.msra.mxu0 0
    %140 = vmatprep.subr.bf16.mxu0 0
    %141 = vmatpush1.bf16.msra.mxu0 0
    %142 = vmatprep.subr.bf16.mxu0 0
    %143 = vmatpush1.bf16.msra.mxu0 0
    %144 = vmatprep.mubr.bf16.mxu0 0
    %145 = vmatmul.mubr.bf16.gmra.mrb[0].mxu0 %v110
    %v146 = vpop.f32.mrb[0].mxu0
    %v147 = vadd.f32 %v94, %v146
    %v148 = vpop.f32.mrb[0].mxu0
    %v149 = vpop.f32.mrb[0].mxu0
    %v150 = vadd.f32 %v94, %v149
    %v151 = vpop.f32.mrb[0].mxu0
    %152 = vdwg.mxu0
    %v153 = vmax.f32 %v147, 0.0
    %v154 = vmax.f32 %v150, 0.0
    %v155 = vld [vmem:[#allocation3] sm:$0xff]
    %v156 = vld [vmem:[#allocation3 + $0x8] sm:$0xff]
    %v157 = vpack.c.bf16 %v154, %v153
    %v158 = vld [vmem:[%s5] sm:$0xf]
    %v159 = vld [vmem:[%s5 + $0x4] sm:$0xf]
    %v160 = vld [vmem:[%s5 + $0x8] sm:$0xf]
    %v161 = vld [vmem:[%s5 + $0xc] sm:$0xf]
    %v162 = vld [vmem:[%s5 + $0x10] sm:$0xf]
    %v163 = vld [vmem:[%s5 + $0x14] sm:$0xf]
    %v164 = vld [vmem:[%s5 + $0x18] sm:$0xf]
    %v165 = vld [vmem:[%s5 + $0x1c] sm:$0xf]
    %v174 = vunpack.c.l.b16 %v158
    %v175 = vunpack.c.l.b16 %v159
    %v176 = vunpack.c.l.b16 %v160
    %v177 = vunpack.c.l.b16 %v161
    %v178 = vunpack.c.l.b16 %v162
    %v179 = vunpack.c.l.b16 %v163
    %v180 = vunpack.c.l.b16 %v164
    %v181 = vunpack.c.l.b16 %v165
    %v182 = vpack.c.b16 %v175, %v174
    %v183 = vpack.c.b16 %v177, %v176
    %v184 = vpack.c.b16 %v179, %v178
    %v185 = vpack.c.b16 %v181, %v180
    %vm190 = vcmask 523264
    %v192 = vsel %vm190, %v157, 0
    %194 = vmatprep.subr.bf16.mxu0 0
    %195 = vmatpush1.bf16.msra.mxu0 %v182
    %196 = vmatprep.subr.bf16.mxu0 0
    %197 = vmatpush1.bf16.msra.mxu0 %v183
    %198 = vmatprep.subr.bf16.mxu0 0
    %199 = vmatpush1.bf16.msra.mxu0 %v184
    %200 = vmatprep.subr.bf16.mxu0 0
    %201 = vmatpush1.bf16.msra.mxu0 %v185
    %202 = vmatprep.subr.bf16.mxu0 0
    %203 = vmatpush1.bf16.msra.mxu0 0
    %204 = vmatprep.subr.bf16.mxu0 0
    %205 = vmatpush1.bf16.msra.mxu0 0
    %206 = vmatprep.subr.bf16.mxu0 0
    %207 = vmatpush1.bf16.msra.mxu0 0
    %208 = vmatprep.subr.bf16.mxu0 0
    %209 = vmatpush1.bf16.msra.mxu0 0
    %210 = vmatprep.subr.bf16.mxu0 0
    %211 = vmatpush1.bf16.msra.mxu0 0
    %212 = vmatprep.subr.bf16.mxu0 0
    %213 = vmatpush1.bf16.msra.mxu0 0
    %214 = vmatprep.subr.bf16.mxu0 0
    %215 = vmatpush1.bf16.msra.mxu0 0
    %216 = vmatprep.subr.bf16.mxu0 0
    %217 = vmatpush1.bf16.msra.mxu0 0
    %218 = vmatprep.subr.bf16.mxu0 0
    %219 = vmatpush1.bf16.msra.mxu0 0
    %220 = vmatprep.subr.bf16.mxu0 0
    %221 = vmatpush1.bf16.msra.mxu0 0
    %222 = vmatprep.subr.bf16.mxu0 0
    %223 = vmatpush1.bf16.msra.mxu0 0
    %224 = vmatprep.subr.bf16.mxu0 0
    %225 = vmatpush1.bf16.msra.mxu0 0
    %226 = vmatprep.mubr.bf16.mxu0 0
    %227 = vmatmul.mubr.bf16.gmra.mrb[0].mxu0 %v192
    %v228 = vpop.f32.mrb[0].mxu0
    %v229 = vadd.f32 0.0, %v228
    %v230 = vpop.f32.mrb[0].mxu0
    %v231 = vpop.f32.mrb[0].mxu0
    %v232 = vadd.f32 0.0, %v231
    %v233 = vpop.f32.mrb[0].mxu0
    %234 = vdwg.mxu0
    %v235 = vadd.f32 %v155, %v229
    %v236 = vadd.f32 %v156, %v232
    %237 = vst.msk [vmem:[#allocation3] sm:$0xff] %vm108, %v235
    %238 = vst.msk [vmem:[#allocation3 + $0x8] sm:$0xff] %vm108, %v236
    // Predicated region
    $region34: #{tpu_custom_call.1} parent=1 // pred_check
      %p239 = pneg %p28
    $region35: #{tpu_custom_call.1} parent=1 // pred_check_branch
      %241 = sbr.rel (%p239) target = $region37
    $region36: #{tpu_custom_call.1} parent=1 // pred_region
      %v242 = vld [vmem:[#allocation3] sm:$0xff]
      %v243 = vld [vmem:[#allocation3 + $0x8] sm:$0xff]
      %v244 = vld [vmem:[%s6] sm:$0x1]
      %v246 = vlaneseq
      %v247 = vshrl.u32 %v246, 7
      %v248 = vsub.s32 0, %v247
      %v249 = vrot.slane %v244, %v248
      %v251 = vadd.f32 %v242, %v249
      %v252 = vadd.f32 %v243, %v249
      %253 = vst.msk [vmem:[#allocation4] sm:$0xff] %vm108, %v251
      %254 = vst.msk [vmem:[#allocation4 + $0x8] sm:$0xff] %vm108, %v252
    $region37: #{tpu_custom_call.1} parent=1 // pred_fallthru
      _
    // Predicated region
    $region38: #{tpu_custom_call.1} parent=1 // pred_check
      _
    $region39: #{tpu_custom_call.1} parent=1 // pred_check_branch
      %256 = sbr.rel (0) target = $region41
    $region40: #{tpu_custom_call.1} parent=1 // pred_region
      %s258 = ssub.s32 256, 256
      %259 = vsyncadd [#allocation5], %s258
      %s260 = sshll.u32 [#allocation4], 4
      %s261 = int_to_ptr.vmem [resolvable:$true] %s260
      %266 = dma.vmem_to_hbm [thread:$0]  %s261, 256, %s7, [#allocation5], 128, 128, 8
    $region41: #{tpu_custom_call.1} parent=1 // pred_fallthru
      _
    // Predicated region
    $region42: #{tpu_custom_call.1} parent=1 // pred_check
      _
    $region43: #{tpu_custom_call.1} parent=1 // pred_check_branch
      %268 = sbr.rel (0) target = $region45
    $region44: #{tpu_custom_call.1} parent=1 // pred_region
      %269 = dma.done [#allocation5], 256
    $region45: #{tpu_custom_call.1} parent=1 // pred_fallthru
      _
    %270 = vsyncpa [#allocation5], 1

</llo_original>
